<compile_context>
chip_gen: v5e
topology: v5e:2x2
jax: 0.10.0
libtpu: 0.0.40
codegen_flags: <defaults>
</compile_context>

<pallas_src>
import functools

import jax
import jax.numpy as jnp
from jax import lax
from jax.experimental import pallas as pl
from jax.experimental.pallas import tpu as pltpu


def _gelu_tanh_f32(x):
    # PyTorch gelu(approximate='tanh'), computed in float32:
    # 0.5 * x * (1 + tanh(sqrt(2/pi) * (x + 0.044715 * x^3)))
    x = x.astype(jnp.float32)
    c = jnp.float32(0.7978845608028654)  # sqrt(2/pi)
    return 0.5 * x * (1.0 + jnp.tanh(c * (x + 0.044715 * (x * x * x))))


def _mlp_kernel_resident(x_ref, w1_ref, b1_ref, w2_ref, b2_ref, o_ref,
                         *, nchunks, ci, compute_dtype):
    # x_ref:  (tm, H)    token tile
    # w1_ref: (H, Ip)    fc1 weight, fully resident
    # b1_ref: (1, Ip)    fc1 bias (f32)
    # w2_ref: (Ip, H)    fc2 weight, fully resident
    # b2_ref: (1, H)     fc2 bias (f32)
    # o_ref:  (tm, H)
    # Rows of a partial last token tile hold stale VMEM; all ops are row-wise
    # and the writeback is masked, so valid rows are unaffected.
    x = x_ref[...]

    if nchunks == 1:
        h = jnp.dot(x, w1_ref[...], preferred_element_type=jnp.float32)
        h = _gelu_tanh_f32(h + b1_ref[...])
        acc = jnp.dot(h.astype(compute_dtype), w2_ref[...],
                      preferred_element_type=jnp.float32)
    else:
        # In-body I chunking: fc1-chunk -> gelu-chunk -> fc2-chunk accumulate.
        # Fully unrolled so the LLO scheduler can overlap MXU and GELU work.
        def body(k, acc):
            off = pl.multiple_of(k * ci, ci)
            h = jnp.dot(x, w1_ref[:, pl.ds(off, ci)],
                        preferred_element_type=jnp.float32)
            h = _gelu_tanh_f32(h + b1_ref[:, pl.ds(off, ci)])
            return acc + jnp.dot(h.astype(compute_dtype),
                                 w2_ref[pl.ds(off, ci), :],
                                 preferred_element_type=jnp.float32)

        acc = lax.fori_loop(0, nchunks, body,
                            jnp.zeros(o_ref.shape, jnp.float32), unroll=True)

    o_ref[...] = (acc + b2_ref[...]).astype(o_ref.dtype)


def _mlp_kernel_streamed(x_ref, w1_ref, b1_ref, w2_ref, b2_ref, o_ref, acc_ref,
                         *, compute_dtype):
    # Weight-streaming fallback: second grid axis walks I in chunks of ti with
    # an f32 VMEM accumulator (pl.when init/finalize).
    k = pl.program_id(1)

    @pl.when(k == 0)
    def _init():
        acc_ref[...] = jnp.zeros_like(acc_ref)

    h = jnp.dot(x_ref[...], w1_ref[...], preferred_element_type=jnp.float32)
    h = _gelu_tanh_f32(h + b1_ref[...])
    acc_ref[...] += jnp.dot(h.astype(compute_dtype), w2_ref[...],
                            preferred_element_type=jnp.float32)

    @pl.when(k == pl.num_programs(1) - 1)
    def _finalize():
        o_ref[...] = (acc_ref[...] + b2_ref[...]).astype(o_ref.dtype)


def _round_up(x, m):
    return ((x + m - 1) // m) * m


def _device_vmem_bytes():
    try:
        info = pltpu.get_tpu_info()
        cap = getattr(info, "vmem_capacity_bytes", None)
        if cap:
            return int(cap)
    except Exception:
        pass
    return 128 * 1024 * 1024  # conservative v5e/v6e default


def siglip_mlp(x, w1_t, b1, w2_t, b2, *, tm=512, ci=512, ti=None,
               compute_dtype=jnp.bfloat16):
    """SigLipMLP forward.

    x:    (B, S, H)
    w1_t: (H, I)  fc1 weight, pre-transposed (nn.Linear stores (I, H))
    b1:   (I,)
    w2_t: (I, H)  fc2 weight, pre-transposed
    b2:   (H,)
    tm:   token tile (parallel grid axis)
    ci:   in-body intermediate chunk for the resident path (multiple of 128)
    ti:   if set, stream weights over a second 'arbitrary' grid axis in chunks
          of ti instead of keeping them resident (VMEM-constrained fallback)
    compute_dtype: bf16 (default, native MXU) or f32; accumulation and GELU
          are always f32.
    Pre-cast weights to `compute_dtype` outside this function when calling it
    repeatedly (the astype below is then a no-op).
    """
    B, S, H = x.shape
    Hw, I = w1_t.shape
    assert Hw == H and w2_t.shape == (I, H) and b1.shape == (I,) and b2.shape == (H,)
    M = B * S
    out_dtype = x.dtype
    if compute_dtype is None:
        compute_dtype = x.dtype

    # Token tile: clamp to the problem; keep >=2 grid steps on the 'parallel'
    # axis when possible so v7x's second TensorCore has work.
    tm = min(tm, _round_up(M, 8))
    if M >= 16:
        tm = min(tm, _round_up((M + 1) // 2, 8))
    tm = max(tm, 8)

    # Intermediate chunk (multiple of 128); pad I up to a multiple of it.
    req = ti if ti is not None else ci
    chunk = _round_up(min(req, _round_up(I, 128)), 128)
    Ip = _round_up(I, chunk)
    nchunks = Ip // chunk

    x2d = x.reshape(M, H).astype(compute_dtype)
    w1c = w1_t.astype(compute_dtype)
    w2c = w2_t.astype(compute_dtype)
    b1f = b1.astype(jnp.float32)
    b2f = b2.reshape(1, H).astype(jnp.float32)
    if Ip != I:
        # Zero padding is inert: gelu(0 + 0) = 0 contributes nothing to fc2.
        w1c = jnp.pad(w1c, ((0, 0), (0, Ip - I)))
        w2c = jnp.pad(w2c, ((0, Ip - I), (0, 0)))
        b1f = jnp.pad(b1f, (0, Ip - I))
    b1f = b1f.reshape(1, Ip)

    cbytes = jnp.dtype(compute_dtype).itemsize
    obytes = jnp.dtype(out_dtype).itemsize
    cost = pl.CostEstimate(
        flops=4 * M * H * Ip,            # two matmuls
        transcendentals=M * Ip,          # tanh in the GELU
        bytes_accessed=(M * H * (cbytes + obytes)
                        + 2 * H * Ip * cbytes + (Ip + H) * 4),
    )
    vmem_cap = _device_vmem_bytes()

    if ti is None:
        # -------- resident-weights path (default) --------
        grid = (pl.cdiv(M, tm),)
        est_vmem = (2 * tm * H * cbytes           # double-buffered x tiles
                    + 2 * tm * H * obytes         # double-buffered out tiles
                    + 2 * (H * Ip + Ip * H) * cbytes   # weights (worst-case 2x)
                    + 2 * (Ip + H) * 4            # biases (f32)
                    + tm * H * 4                  # f32 accumulator
                    + tm * chunk * (4 + cbytes))  # f32 h chunk + cast copy
        vmem_limit = int(min(int(vmem_cap * 0.85),
                             max(est_vmem + (8 << 20), 32 << 20)))
        kernel = functools.partial(_mlp_kernel_resident, nchunks=nchunks,
                                   ci=chunk, compute_dtype=compute_dtype)
        out2d = pl.pallas_call(
            kernel,
            out_shape=jax.ShapeDtypeStruct((M, H), out_dtype),
            grid_spec=pltpu.PrefetchScalarGridSpec(
                num_scalar_prefetch=0,
                grid=grid,
                in_specs=[
                    pl.BlockSpec((tm, H), lambda i: (i, 0)),   # x tile
                    pl.BlockSpec((H, Ip), lambda i: (0, 0)),   # fc1 weight
                    pl.BlockSpec((1, Ip), lambda i: (0, 0)),   # fc1 bias
                    pl.BlockSpec((Ip, H), lambda i: (0, 0)),   # fc2 weight
                    pl.BlockSpec((1, H), lambda i: (0, 0)),    # fc2 bias
                ],
                out_specs=pl.BlockSpec((tm, H), lambda i: (i, 0)),
            ),
            compiler_params=pltpu.CompilerParams(
                dimension_semantics=("parallel",),
                vmem_limit_bytes=vmem_limit,
            ),
            cost_estimate=cost,
        )(x2d, w1c, b1f, w2c, b2f)
    else:
        # -------- weight-streaming fallback (ti < I) --------
        grid = (pl.cdiv(M, tm), nchunks)
        est_vmem = (2 * tm * H * cbytes + 2 * tm * H * obytes
                    + 2 * (H * chunk + chunk * H) * cbytes
                    + 2 * (chunk + H) * 4
                    + tm * H * 4
                    + tm * chunk * (4 + cbytes))
        vmem_limit = int(min(int(vmem_cap * 0.85),
                             max(est_vmem + (8 << 20), 32 << 20)))
        kernel = functools.partial(_mlp_kernel_streamed,
                                   compute_dtype=compute_dtype)
        out2d = pl.pallas_call(
            kernel,
            out_shape=jax.ShapeDtypeStruct((M, H), out_dtype),
            grid_spec=pltpu.PrefetchScalarGridSpec(
                num_scalar_prefetch=0,
                grid=grid,
                in_specs=[
                    pl.BlockSpec((tm, H), lambda i, k: (i, 0)),      # x tile
                    pl.BlockSpec((H, chunk), lambda i, k: (0, k)),   # fc1 w chunk
                    pl.BlockSpec((1, chunk), lambda i, k: (0, k)),   # fc1 b chunk
                    pl.BlockSpec((chunk, H), lambda i, k: (k, 0)),   # fc2 w chunk
                    pl.BlockSpec((1, H), lambda i, k: (0, 0)),       # fc2 bias
                ],
                out_specs=pl.BlockSpec((tm, H), lambda i, k: (i, 0)),
                scratch_shapes=[pltpu.VMEM((tm, H), jnp.float32)],
            ),
            compiler_params=pltpu.CompilerParams(
                dimension_semantics=("parallel", "arbitrary"),
                vmem_limit_bytes=vmem_limit,
            ),
            cost_estimate=cost,
        )(x2d, w1c, b1f, w2c, b2f)

    return out2d.reshape(B, S, H)


def reference_mlp(x, w1_t, b1, w2_t, b2):
    h = jnp.einsum("bsh,hi->bsi", x, w1_t) + b1
    h = _gelu_tanh_f32(h)
    return jnp.einsum("bsi,ih->bsh", h, w2_t) + b2


if __name__ == "__main__":
    # Small config consistent with SiglipVisionConfig fields used by SigLipMLP.
    batch, seq = 2, 8
    hidden_size = 64
    intermediate_size = 256

    key = jax.random.PRNGKey(0)
    kx, kw1, kb1, kw2, kb2 = jax.random.split(key, 5)

    x = jax.random.normal(kx, (batch, seq, hidden_size), dtype=jnp.float32)
    # nn.Linear stores weight as (out, in); pre-transpose to (in, out).
    w1 = jax.random.normal(kw1, (intermediate_size, hidden_size), jnp.float32) * 0.02
    b1 = jax.random.normal(kb1, (intermediate_size,), jnp.float32) * 0.02
    w2 = jax.random.normal(kw2, (hidden_size, intermediate_size), jnp.float32) * 0.02
    b2 = jax.random.normal(kb2, (hidden_size,), jnp.float32) * 0.02
    w1_t = w1.T  # (hidden, intermediate)
    w2_t = w2.T  # (intermediate, hidden)

    ref = reference_mlp(x, w1_t, b1, w2_t, b2)

    # 1) f32 compute, resident weights, single in-body chunk.
    out_f32 = jax.block_until_ready(
        siglip_mlp(x, w1_t, b1, w2_t, b2, compute_dtype=jnp.float32))
    assert out_f32.shape == (batch, seq, hidden_size)
    assert jnp.allclose(out_f32, ref, atol=2e-5, rtol=1e-4), "f32 resident mismatch"

    # 2) f32 compute, resident weights, multi-chunk in-body loop (ci=128).
    out_chunked = jax.block_until_ready(
        siglip_mlp(x, w1_t, b1, w2_t, b2, ci=128, compute_dtype=jnp.float32))
    assert jnp.allclose(out_chunked, ref, atol=2e-5, rtol=1e-4), "f32 chunked mismatch"

    # 3) f32 compute, weight-streaming grid path (VMEM-constrained fallback).
    out_streamed = jax.block_until_ready(
        siglip_mlp(x, w1_t, b1, w2_t, b2, ti=128, compute_dtype=jnp.float32))
    assert jnp.allclose(out_streamed, ref, atol=2e-5, rtol=1e-4), "f32 streamed mismatch"

    # 4) Default bf16 compute path (pre-cast weights once, as in production).
    w1_bf, w2_bf = w1_t.astype(jnp.bfloat16), w2_t.astype(jnp.bfloat16)
    out_bf16 = jax.block_until_ready(siglip_mlp(x, w1_bf, b1, w2_bf, b2))
    assert jnp.allclose(out_bf16.astype(jnp.float32), ref,
                        atol=1e-2, rtol=5e-2), "bf16 mismatch"

    # 5) Non-128-multiple intermediate size (exercises zero padding of I).
    I2 = 200
    w1b = jax.random.normal(kw1, (I2, hidden_size), jnp.float32) * 0.02
    b1b = jax.random.normal(kb1, (I2,), jnp.float32) * 0.02
    w2b = jax.random.normal(kw2, (hidden_size, I2), jnp.float32) * 0.02
    ref2 = reference_mlp(x, w1b.T, b1b, w2b.T, b2)
    out_pad = jax.block_until_ready(
        siglip_mlp(x, w1b.T, b1b, w2b.T, b2, ci=128, compute_dtype=jnp.float32))
    assert jnp.allclose(out_pad, ref2, atol=2e-5, rtol=1e-4), "padded-I mismatch"

    print("KERNEL_OK")
</pallas_src>

<mosaic_0001>
module attributes {stable_mosaic.version = 11 : i64} {
  func.func @_mlp_kernel_resident(%arg0: i32, %arg1: memref<8x64xf32, #tpu.memory_space<vmem>>, %arg2: memref<64x256xf32, #tpu.memory_space<vmem>>, %arg3: memref<1x256xf32, #tpu.memory_space<vmem>>, %arg4: memref<256x64xf32, #tpu.memory_space<vmem>>, %arg5: memref<1x64xf32, #tpu.memory_space<vmem>>, %arg6: memref<8x64xf32, #tpu.memory_space<vmem>>) attributes {dimension_semantics = [#tpu.dimension_semantics<parallel>], iteration_bounds = array<i64: 2>, scalar_prefetch = 0 : i64, scratch_operands = 0 : i64, tpu.core_type = #tpu.core_type<tc>, window_params = [{transform_indices = @transform_0, window_bounds = array<i64: 8, 64>}, {pipeline_mode = #tpu.pipeline_mode<synchronous>, transform_indices = @transform_1, window_bounds = array<i64: 64, 256>}, {pipeline_mode = #tpu.pipeline_mode<synchronous>, transform_indices = @transform_2, window_bounds = array<i64: 1, 256>}, {pipeline_mode = #tpu.pipeline_mode<synchronous>, transform_indices = @transform_3, window_bounds = array<i64: 256, 64>}, {pipeline_mode = #tpu.pipeline_mode<synchronous>, transform_indices = @transform_4, window_bounds = array<i64: 1, 64>}, {transform_indices = @transform_5, window_bounds = array<i64: 8, 64>}]} {
    %c0 = arith.constant 0 : index
    %c0_0 = arith.constant 0 : index
    %0 = vector.load %arg1[%c0, %c0_0] : memref<8x64xf32, #tpu.memory_space<vmem>>, vector<8x64xf32>
    %c0_1 = arith.constant 0 : index
    %c0_2 = arith.constant 0 : index
    %1 = vector.load %arg2[%c0_1, %c0_2] : memref<64x256xf32, #tpu.memory_space<vmem>>, vector<64x256xf32>
    %cst = arith.constant dense<0.000000e+00> : vector<8x256xf32>
    %2 = tpu.matmul %0, %1, %cst {dimension_numbers = #tpu.dot_dimension_numbers<[1], [0], [0], [1], [0, 0, 1, 1], [], []>} : vector<8x64xf32>, vector<64x256xf32>, vector<8x256xf32> -> vector<8x256xf32>
    %c0_3 = arith.constant 0 : index
    %c0_4 = arith.constant 0 : index
    %3 = vector.load %arg3[%c0_3, %c0_4] : memref<1x256xf32, #tpu.memory_space<vmem>>, vector<1x256xf32>
    %4 = vector.broadcast %3 : vector<1x256xf32> to vector<8x256xf32>
    %5 = arith.addf %2, %4 : vector<8x256xf32>
    %cst_5 = arith.constant 5.000000e-01 : f32
    %6 = vector.broadcast %cst_5 : f32 to vector<8x256xf32>
    %7 = arith.mulf %6, %5 : vector<8x256xf32>
    %8 = arith.mulf %5, %5 : vector<8x256xf32>
    %9 = arith.mulf %8, %5 : vector<8x256xf32>
    %cst_6 = arith.constant 4.471500e-02 : f32
    %10 = vector.broadcast %cst_6 : f32 to vector<8x256xf32>
    %11 = arith.mulf %10, %9 : vector<8x256xf32>
    %12 = arith.addf %5, %11 : vector<8x256xf32>
    %cst_7 = arith.constant 0.797884583 : f32
    %13 = vector.broadcast %cst_7 : f32 to vector<8x256xf32>
    %14 = arith.mulf %13, %12 : vector<8x256xf32>
    %15 = math.tanh %14 : vector<8x256xf32>
    %cst_8 = arith.constant 1.000000e+00 : f32
    %16 = vector.broadcast %cst_8 : f32 to vector<8x256xf32>
    %17 = arith.addf %16, %15 : vector<8x256xf32>
    %18 = arith.mulf %7, %17 : vector<8x256xf32>
    %c0_9 = arith.constant 0 : index
    %c0_10 = arith.constant 0 : index
    %19 = vector.load %arg4[%c0_9, %c0_10] : memref<256x64xf32, #tpu.memory_space<vmem>>, vector<256x64xf32>
    %cst_11 = arith.constant dense<0.000000e+00> : vector<8x64xf32>
    %20 = tpu.matmul %18, %19, %cst_11 {dimension_numbers = #tpu.dot_dimension_numbers<[1], [0], [0], [1], [0, 0, 1, 1], [], []>} : vector<8x256xf32>, vector<256x64xf32>, vector<8x64xf32> -> vector<8x64xf32>
    %c0_12 = arith.constant 0 : index
    %c0_13 = arith.constant 0 : index
    %21 = vector.load %arg5[%c0_12, %c0_13] : memref<1x64xf32, #tpu.memory_space<vmem>>, vector<1x64xf32>
    %22 = vector.broadcast %21 : vector<1x64xf32> to vector<8x64xf32>
    %23 = arith.addf %20, %22 : vector<8x64xf32>
    %c0_14 = arith.constant 0 : index
    %c0_15 = arith.constant 0 : index
    %24 = vector.load %arg6[%c0_14, %c0_15] : memref<8x64xf32, #tpu.memory_space<vmem>>, vector<8x64xf32>
    tpu.vector_store %arg6[%c0_14, %c0_15], %23 {strides = array<i32>} : memref<8x64xf32, #tpu.memory_space<vmem>>, vector<8x64xf32>,
    return
  }
  func.func @transform_0(%arg0: i32) -> (i32, i32) {
    %c0_i32 = arith.constant 0 : i32
    %c0_i32_0 = arith.constant 0 : i32
    return %arg0, %c0_i32 : i32, i32
  }
  func.func @transform_1(%arg0: i32) -> (i32, i32) {
    %c0_i32 = arith.constant 0 : i32
    %c0_i32_0 = arith.constant 0 : i32
    %c0_i32_1 = arith.constant 0 : i32
    return %c0_i32, %c0_i32_0 : i32, i32
  }
  func.func @transform_2(%arg0: i32) -> (i32, i32) {
    %c0_i32 = arith.constant 0 : i32
    %c0_i32_0 = arith.constant 0 : i32
    %c0_i32_1 = arith.constant 0 : i32
    return %c0_i32, %c0_i32_0 : i32, i32
  }
  func.func @transform_3(%arg0: i32) -> (i32, i32) {
    %c0_i32 = arith.constant 0 : i32
    %c0_i32_0 = arith.constant 0 : i32
    %c0_i32_1 = arith.constant 0 : i32
    return %c0_i32, %c0_i32_0 : i32, i32
  }
  func.func @transform_4(%arg0: i32) -> (i32, i32) {
    %c0_i32 = arith.constant 0 : i32
    %c0_i32_0 = arith.constant 0 : i32
    %c0_i32_1 = arith.constant 0 : i32
    return %c0_i32, %c0_i32_0 : i32, i32
  }
  func.func @transform_5(%arg0: i32) -> (i32, i32) {
    %c0_i32 = arith.constant 0 : i32
    %c0_i32_0 = arith.constant 0 : i32
    return %arg0, %c0_i32 : i32, i32
  }
}

</mosaic_0001>

<llo_original>
// kernel: tpu_custom_call.1
$region0: #{tpu_custom_call.1}
  #allocation0 [shape = 'u32[]', space=smem, size = 0x4, offset = 0x4, fixed_abs, tag = 'smem constant byte address 0x4 - core index']
  #allocation1 [shape = 'u32[72,128]{1,0:T(1,128)}', space=vmem, size = 0x9000, scoped, tag = 'internal scratch']
  %s0 = inlined_call_operand.vmem [shape: f32[16,64], index: 0, kind: input, shape index: {}]
  %s1 = inlined_call_operand.vmem [shape: f32[64,256], index: 1, kind: input, shape index: {}]
  %s2 = inlined_call_operand.vmem [shape: f32[1,256], index: 2, kind: input, shape index: {}]
  %s3 = inlined_call_operand.vmem [shape: f32[256,64], index: 3, kind: input, shape index: {}]
  %s4 = inlined_call_operand.vmem [shape: f32[1,64], index: 4, kind: input, shape index: {}]
  %s5 = inlined_call_operand.hbm [shape: f32[16,64], index: 5, kind: output, shape index: {}]
  %s6 = sld [smem:[#allocation0]]
  $region53: #{tpu_custom_call.1} parent=0
    _
  %s8 = ssub.s32 1, %s6
  %s9 = scalar_select 0, %s8, %s6
  $region1: #{tpu_custom_call.1} parent=0
    #allocation2 [shape = 'u8[8192]{0}', space=vmem, size = 0x2000, scoped, tag = 'output window, operand 0']
    #allocation3 [shape = 's32[2]{0}', space=sflag, size = 0x8, scoped, tag = 'scoped memory for tpu_custom_call.1']
    %10 = vsyncpa [#allocation3], 0
    %s11 = scalar_lea.sflag [#allocation3], 1
    %12 = vsyncpa %s11, 0
    loop: start=0, step=1, limit=4
    $region2: #{tpu_custom_call.1} parent=1 // loop_pre_header
      _
    $region3: #{tpu_custom_call.1} parent=1 // loop_header
      %s14 = sphi 0, %s18
      %p15 = scmp.ge.s32.totalorder %s14, 4
      %s24 = sphi 0, %s26
      %s27 = sphi 0, %s24
      %s28 = sphi 0, %s27
      %s44 = sphi 0, %s28
      %s48 = sphi 0, %s48
      %s50 = sphi 0, %s48
      %s51 = sphi 0, %s50
      %s65 = sphi 0, %s51
      %s69 = sphi 0, %s69
      %s71 = sphi 0, %s69
      %s72 = sphi 0, %s71
      %s86 = sphi 0, %s72
      %s90 = sphi 0, %s90
      %s92 = sphi 0, %s90
      %s93 = sphi 0, %s92
      %s107 = sphi 0, %s93
      %s111 = sphi 0, %s111
      %s113 = sphi 0, %s111
      %s114 = sphi 0, %s113
      %s128 = sphi 0, %s114
      %s134 = sphi 0, %s136
      %s137 = sphi 0, %s134
      %s138 = sphi 0, %s137
      %s154 = sphi 0, %s138
    $region4: #{tpu_custom_call.1} parent=1 // loop_header_branch
      %17 = sbr.rel (%p15) target = $region8
    $region5: #{tpu_custom_call.1} parent=1 // loop_body
      %s19 = ssub.s32 %s14, 1
      %s20 = ssub.s32 %s14, 2
      %s21 = sadd.s32 %s14, 1
      %s22 = ssub.s32 %s14, %s21
      %p23 = scmp.eq.s32.totalorder %s22, 0
      %s25 = sadd.s32 %s24, 1
      %s26 = scalar_select %p23, %s24, %s25
      %p29 = pneg %p23
      %p30 = scmp.eq.s32.totalorder %s14, 1
      %p31 = por %p29, %p30
      %p32 = scmp.ne.s32.totalorder %s24, %s27
      %p33 = scmp.eq.s32.totalorder %s14, 0
      %p34 = por %p32, %p33
      %p35 = scmp.ne.s32.totalorder %s24, %s27
      %p36 = scmp.eq.s32.totalorder %s19, 1
      %p37 = por %p35, %p36
      %p38 = scmp.ne.s32.totalorder %s27, %s28
      %p39 = scmp.eq.s32.totalorder %s19, 0
      %p40 = por %p38, %p39
      %p41 = scmp.ne.s32.totalorder %s27, %s28
      %p42 = scmp.eq.s32.totalorder %s20, 1
      %p43 = por %p41, %p42
      %p45 = scmp.ne.s32.totalorder %s28, %s44
      %p46 = scmp.eq.s32.totalorder %s20, 0
      %p47 = por %p45, %p46
      %s49 = sadd.s32 %s48, 1
      %p52 = scmp.eq.s32.totalorder %s14, 1
      %p53 = scmp.ne.s32.totalorder %s48, %s50
      %p54 = scmp.eq.s32.totalorder %s14, 0
      %p55 = por %p53, %p54
      %p56 = scmp.ne.s32.totalorder %s48, %s50
      %p57 = scmp.eq.s32.totalorder %s19, 1
      %p58 = por %p56, %p57
      %p59 = scmp.ne.s32.totalorder %s50, %s51
      %p60 = scmp.eq.s32.totalorder %s19, 0
      %p61 = por %p59, %p60
      %p62 = scmp.ne.s32.totalorder %s50, %s51
      %p63 = scmp.eq.s32.totalorder %s20, 1
      %p64 = por %p62, %p63
      %p66 = scmp.ne.s32.totalorder %s51, %s65
      %p67 = scmp.eq.s32.totalorder %s20, 0
      %p68 = por %p66, %p67
      %s70 = sadd.s32 %s69, 1
      %p73 = scmp.eq.s32.totalorder %s14, 1
      %p74 = scmp.ne.s32.totalorder %s69, %s71
      %p75 = scmp.eq.s32.totalorder %s14, 0
      %p76 = por %p74, %p75
      %p77 = scmp.ne.s32.totalorder %s69, %s71
      %p78 = scmp.eq.s32.totalorder %s19, 1
      %p79 = por %p77, %p78
      %p80 = scmp.ne.s32.totalorder %s71, %s72
      %p81 = scmp.eq.s32.totalorder %s19, 0
      %p82 = por %p80, %p81
      %p83 = scmp.ne.s32.totalorder %s71, %s72
      %p84 = scmp.eq.s32.totalorder %s20, 1
      %p85 = por %p83, %p84
      %p87 = scmp.ne.s32.totalorder %s72, %s86
      %p88 = scmp.eq.s32.totalorder %s20, 0
      %p89 = por %p87, %p88
      %s91 = sadd.s32 %s90, 1
      %p94 = scmp.eq.s32.totalorder %s14, 1
      %p95 = scmp.ne.s32.totalorder %s90, %s92
      %p96 = scmp.eq.s32.totalorder %s14, 0
      %p97 = por %p95, %p96
      %p98 = scmp.ne.s32.totalorder %s90, %s92
      %p99 = scmp.eq.s32.totalorder %s19, 1
      %p100 = por %p98, %p99
      %p101 = scmp.ne.s32.totalorder %s92, %s93
      %p102 = scmp.eq.s32.totalorder %s19, 0
      %p103 = por %p101, %p102
      %p104 = scmp.ne.s32.totalorder %s92, %s93
      %p105 = scmp.eq.s32.totalorder %s20, 1
      %p106 = por %p104, %p105
      %p108 = scmp.ne.s32.totalorder %s93, %s107
      %p109 = scmp.eq.s32.totalorder %s20, 0
      %p110 = por %p108, %p109
      %s112 = sadd.s32 %s111, 1
      %p115 = scmp.eq.s32.totalorder %s14, 1
      %p116 = scmp.ne.s32.totalorder %s111, %s113
      %p117 = scmp.eq.s32.totalorder %s14, 0
      %p118 = por %p116, %p117
      %p119 = scmp.ne.s32.totalorder %s111, %s113
      %p120 = scmp.eq.s32.totalorder %s19, 1
      %p121 = por %p119, %p120
      %p122 = scmp.ne.s32.totalorder %s113, %s114
      %p123 = scmp.eq.s32.totalorder %s19, 0
      %p124 = por %p122, %p123
      %p125 = scmp.ne.s32.totalorder %s113, %s114
      %p126 = scmp.eq.s32.totalorder %s20, 1
      %p127 = por %p125, %p126
      %p129 = scmp.ne.s32.totalorder %s114, %s128
      %p130 = scmp.eq.s32.totalorder %s20, 0
      %p131 = por %p129, %p130
      %s132 = ssub.s32 %s14, %s21
      %p133 = scmp.eq.s32.totalorder %s132, 0
      %s135 = sadd.s32 %s134, 1
      %s136 = scalar_select %p133, %s134, %s135
      %p139 = pneg %p133
      %p140 = scmp.eq.s32.totalorder %s14, 1
      %p141 = por %p139, %p140
      %p142 = scmp.ne.s32.totalorder %s134, %s137
      %p143 = scmp.eq.s32.totalorder %s14, 0
      %p144 = por %p142, %p143
      %p145 = scmp.ne.s32.totalorder %s134, %s137
      %p146 = scmp.eq.s32.totalorder %s19, 1
      %p147 = por %p145, %p146
      %p148 = scmp.ne.s32.totalorder %s137, %s138
      %p149 = scmp.eq.s32.totalorder %s19, 0
      %p150 = por %p148, %p149
      %p151 = scmp.ne.s32.totalorder %s137, %s138
      %p152 = scmp.eq.s32.totalorder %s20, 1
      %p153 = por %p151, %p152
      %p155 = scmp.ne.s32.totalorder %s138, %s154
      %p156 = scmp.eq.s32.totalorder %s20, 0
      %p157 = por %p155, %p156
      %p158 = scmp.le.s32.totalorder 1, %s14
      %p159 = scmp.lt.s32.totalorder %s14, 3
      %p160 = pnand %p158, %p159
      %p161 = pneg %p160
      // Predicated region
      $region9: #{tpu_custom_call.1} parent=5 // pred_check
        _
      $region10: #{tpu_custom_call.1} parent=5 // pred_check_branch
        %163 = sbr.rel (%p160) target = $region12
      $region11: #{tpu_custom_call.1} parent=5 // pred_region
        %s164 = ssub.s32 %s14, 1
        // Predicated region
        $region13: #{tpu_custom_call.1} parent=11 // pred_check
          %p165 = pneg %p61
        $region14: #{tpu_custom_call.1} parent=11 // pred_check_branch
          %167 = sbr.rel (%p165) target = $region16
        $region15: #{tpu_custom_call.1} parent=11 // pred_region
          _
        $region16: #{tpu_custom_call.1} parent=11 // pred_fallthru
          _
        // Predicated region
        $region17: #{tpu_custom_call.1} parent=11 // pred_check
          %p168 = pneg %p82
        $region18: #{tpu_custom_call.1} parent=11 // pred_check_branch
          %170 = sbr.rel (%p168) target = $region20
        $region19: #{tpu_custom_call.1} parent=11 // pred_region
          _
        $region20: #{tpu_custom_call.1} parent=11 // pred_fallthru
          _
        // Predicated region
        $region21: #{tpu_custom_call.1} parent=11 // pred_check
          %p171 = pneg %p103
        $region22: #{tpu_custom_call.1} parent=11 // pred_check_branch
          %173 = sbr.rel (%p171) target = $region24
        $region23: #{tpu_custom_call.1} parent=11 // pred_region
          _
        $region24: #{tpu_custom_call.1} parent=11 // pred_fallthru
          _
        // Predicated region
        $region25: #{tpu_custom_call.1} parent=11 // pred_check
          %p174 = pneg %p124
        $region26: #{tpu_custom_call.1} parent=11 // pred_check_branch
          %176 = sbr.rel (%p174) target = $region28
        $region27: #{tpu_custom_call.1} parent=11 // pred_region
          _
        $region28: #{tpu_custom_call.1} parent=11 // pred_fallthru
          _
      $region12: #{tpu_custom_call.1} parent=5 // pred_fallthru
        _
      %p177 = scmp.lt.s32.totalorder %s14, 2
      // Predicated region
      $region29: #{tpu_custom_call.1} parent=5 // pred_check
        %p178 = pneg %p177
      $region30: #{tpu_custom_call.1} parent=5 // pred_check_branch
        %180 = sbr.rel (%p178) target = $region32
      $region31: #{tpu_custom_call.1} parent=5 // pred_region
        // Predicated region
        $region33: #{tpu_custom_call.1} parent=31 // pred_check
          %p181 = pneg %p34
        $region34: #{tpu_custom_call.1} parent=31 // pred_check_branch
          %183 = sbr.rel (%p181) target = $region36
        $region35: #{tpu_custom_call.1} parent=31 // pred_region
          %p184 = scmp.lt.s32.totalorder %s14, 1
          %s185 = scalar_select %p184, %s14, 1
          %s186 = smul.addr %s185, 8
          %s187 = scalar_lea.vmem %s0, %s186
        $region36: #{tpu_custom_call.1} parent=31 // pred_fallthru
          _
      $region32: #{tpu_custom_call.1} parent=5 // pred_fallthru
        _
      %p188 = scmp.le.s32.totalorder 1, %s14
      %p189 = scmp.lt.s32.totalorder %s14, 3
      %p190 = pnand %p188, %p189
      %p191 = pneg %p190
      // Predicated region
      $region37: #{tpu_custom_call.1} parent=5 // pred_check
        _
      $region38: #{tpu_custom_call.1} parent=5 // pred_check_branch
        %193 = sbr.rel (%p190) target = $region40
      $region39: #{tpu_custom_call.1} parent=5 // pred_region
        %s194 = ssub.s32 %s14, 1
        %p195 = scmp.lt.s32.totalorder %s19, 1
        %s196 = scalar_select %p195, %s19, 1
        %s197 = smul.addr %s196, 8
        %s198 = scalar_lea.vmem %s0, %s197
        %p199 = pneg %p40
        %p200 = pneg %p37
        %p201 = pneg %p61
        %p202 = pneg %p58
        %p203 = pneg %p82
        %p204 = pneg %p79
        %p205 = pneg %p103
        %p206 = pneg %p100
        %p207 = pneg %p124
        %p208 = pneg %p121
        %p209 = pneg %p150
        %p210 = pneg %p147
        %s211 = sand.u32 %s137, 1
        %s212 = scalar_lea.sflag [#allocation3], %s211
        %s213 = sand.u32 %s137, 1
        %s214 = smul.addr %s213, 8
        %s215 = scalar_lea.vmem [#allocation2], %s214
        %p216 = scmp.lt.s32.totalorder %s19, 1
        %s217 = scalar_select %p216, %s19, 1
        %s218 = smul.addr %s217, 8
        %s219 = scalar_lea.vmem %s0, %s218
        %v220 = vld [vmem:[%s219] sm:$0xff]
        %v221 = vld [vmem:[%s1] sm:$0xff]
        %v222 = vld [vmem:[%s1 + $0x8] sm:$0xff]
        %v223 = vld [vmem:[%s1 + $0x10] sm:$0xff]
        %v224 = vld [vmem:[%s1 + $0x18] sm:$0xff]
        %v225 = vld [vmem:[%s1 + $0x20] sm:$0xff]
        %v226 = vld [vmem:[%s1 + $0x28] sm:$0xff]
        %v227 = vld [vmem:[%s1 + $0x30] sm:$0xff]
        %v228 = vld [vmem:[%s1 + $0x38] sm:$0xff]
        %v229 = vld [vmem:[%s1 + $0x40] sm:$0xff]
        %v230 = vld [vmem:[%s1 + $0x48] sm:$0xff]
        %v231 = vld [vmem:[%s1 + $0x50] sm:$0xff]
        %v232 = vld [vmem:[%s1 + $0x58] sm:$0xff]
        %v233 = vld [vmem:[%s1 + $0x60] sm:$0xff]
        %v234 = vld [vmem:[%s1 + $0x68] sm:$0xff]
        %v235 = vld [vmem:[%s1 + $0x70] sm:$0xff]
        %v236 = vld [vmem:[%s1 + $0x78] sm:$0xff]
        %v237 = vld [vmem:[%s2] sm:$0x3]
        %v239 = vperm.slane %v237, 0
        %v240 = vperm.slane %v237, 1
        %vm243 = vcmask 523264
        %v245 = vsel %vm243, %v220, 0
        %247 = vmatpush.msra.mxu0 0.0
        %248 = vmatpush.msra.mxu0 0.0
        %249 = vmatpush.msra.mxu0 0.0
        %250 = vmatpush.msra.mxu0 0.0
        %251 = vmatpush.msra.mxu0 0.0
        %252 = vmatpush.msra.mxu0 0.0
        %253 = vmatpush.msra.mxu0 0.0
        %254 = vmatpush.msra.mxu0 0.0
        %255 = vmatpush.msra.mxu0 %v235
        %256 = vmatpush.msra.mxu0 %v233
        %257 = vmatpush.msra.mxu0 %v231
        %258 = vmatpush.msra.mxu0 %v229
        %259 = vmatpush.msra.mxu0 %v227
        %260 = vmatpush.msra.mxu0 %v225
        %261 = vmatpush.msra.mxu0 %v223
        %262 = vmatpush.msra.mxu0 %v221
        %263 = vmatmul.f32.gmra.mxu0 %v245
        %v264 = vpop.f32.mrf.mxu0
        %v265 = vadd.f32 %v239, %v264
        %266 = vdwg.mxu0
        %267 = vmatpush.msra.mxu0 0.0
        %268 = vmatpush.msra.mxu0 0.0
        %269 = vmatpush.msra.mxu0 0.0
        %270 = vmatpush.msra.mxu0 0.0
        %271 = vmatpush.msra.mxu0 0.0
        %272 = vmatpush.msra.mxu0 0.0
        %273 = vmatpush.msra.mxu0 0.0
        %274 = vmatpush.msra.mxu0 0.0
        %275 = vmatpush.msra.mxu0 %v236
        %276 = vmatpush.msra.mxu0 %v234
        %277 = vmatpush.msra.mxu0 %v232
        %278 = vmatpush.msra.mxu0 %v230
        %279 = vmatpush.msra.mxu0 %v228
        %280 = vmatpush.msra.mxu0 %v226
        %281 = vmatpush.msra.mxu0 %v224
        %282 = vmatpush.msra.mxu0 %v222
        %283 = vmatmul.f32.gmra.mxu0 %v245
        %v284 = vpop.f32.mrf.mxu0
        %v285 = vadd.f32 %v240, %v284
        %286 = vdwg.mxu0
        %v287 = vmul.f32 %v265, 0.5
        %v288 = vmul.f32 %v285, 0.5
        %v289 = vmul.f32 %v265, %v265
        %v290 = vmul.f32 %v285, %v285
        %v291 = vmul.f32 %v289, %v265
        %v292 = vmul.f32 %v290, %v285
        %v293 = vmul.f32 %v291, 0.044715
        %v294 = vmul.f32 %v292, 0.044715
        %v295 = vadd.f32 %v265, %v293
        %v296 = vadd.f32 %v285, %v294
        %v297 = vmul.f32 %v295, 0.7978846
        %v298 = vmul.f32 %v296, 0.7978846
        %v299 = vtanh.pop %v297
        %v300 = vtanh.pop %v298
        %v301 = vadd.f32 %v299, 1.0
        %v302 = vadd.f32 %v300, 1.0
        %v303 = vmul.f32 %v287, %v301
        %v304 = vmul.f32 %v288, %v302
        %v305 = vld [vmem:[%s3] sm:$0xff]
        %v306 = vld [vmem:[%s3 + $0x8] sm:$0xff]
        %v307 = vld [vmem:[%s3 + $0x10] sm:$0xff]
        %v308 = vld [vmem:[%s3 + $0x18] sm:$0xff]
        %v309 = vld [vmem:[%s3 + $0x20] sm:$0xff]
        %v310 = vld [vmem:[%s3 + $0x28] sm:$0xff]
        %v311 = vld [vmem:[%s3 + $0x30] sm:$0xff]
        %v312 = vld [vmem:[%s3 + $0x38] sm:$0xff]
        %v313 = vld [vmem:[%s3 + $0x40] sm:$0xff]
        %v314 = vld [vmem:[%s3 + $0x48] sm:$0xff]
        %v315 = vld [vmem:[%s3 + $0x50] sm:$0xff]
        %v316 = vld [vmem:[%s3 + $0x58] sm:$0xff]
        %v317 = vld [vmem:[%s3 + $0x60] sm:$0xff]
        %v318 = vld [vmem:[%s3 + $0x68] sm:$0xff]
        %v319 = vld [vmem:[%s3 + $0x70] sm:$0xff]
        %v320 = vld [vmem:[%s3 + $0x78] sm:$0xff]
        %v321 = vld [vmem:[%s3 + $0x80] sm:$0xff]
        %v322 = vld [vmem:[%s3 + $0x88] sm:$0xff]
        %v323 = vld [vmem:[%s3 + $0x90] sm:$0xff]
        %v324 = vld [vmem:[%s3 + $0x98] sm:$0xff]
        %v325 = vld [vmem:[%s3 + $0xa0] sm:$0xff]
        %v326 = vld [vmem:[%s3 + $0xa8] sm:$0xff]
        %v327 = vld [vmem:[%s3 + $0xb0] sm:$0xff]
        %v328 = vld [vmem:[%s3 + $0xb8] sm:$0xff]
        %v329 = vld [vmem:[%s3 + $0xc0] sm:$0xff]
        %v330 = vld [vmem:[%s3 + $0xc8] sm:$0xff]
        %v331 = vld [vmem:[%s3 + $0xd0] sm:$0xff]
        %v332 = vld [vmem:[%s3 + $0xd8] sm:$0xff]
        %v333 = vld [vmem:[%s3 + $0xe0] sm:$0xff]
        %v334 = vld [vmem:[%s3 + $0xe8] sm:$0xff]
        %v335 = vld [vmem:[%s3 + $0xf0] sm:$0xff]
        %v336 = vld [vmem:[%s3 + $0xf8] sm:$0xff]
        %v337 = vld [vmem:[%s4] sm:$0x1]
        %v339 = vperm.slane %v337, 0
        %341 = vmatpush.msra.mxu0 %v320
        %342 = vmatpush.msra.mxu0 %v319
        %343 = vmatpush.msra.mxu0 %v318
        %344 = vmatpush.msra.mxu0 %v317
        %345 = vmatpush.msra.mxu0 %v316
        %346 = vmatpush.msra.mxu0 %v315
        %347 = vmatpush.msra.mxu0 %v314
        %348 = vmatpush.msra.mxu0 %v313
        %349 = vmatpush.msra.mxu0 %v312
        %350 = vmatpush.msra.mxu0 %v311
        %351 = vmatpush.msra.mxu0 %v310
        %352 = vmatpush.msra.mxu0 %v309
        %353 = vmatpush.msra.mxu0 %v308
        %354 = vmatpush.msra.mxu0 %v307
        %355 = vmatpush.msra.mxu0 %v306
        %356 = vmatpush.msra.mxu0 %v305
        %357 = vmatmul.f32.gmra.mxu0 %v303
        %v358 = vpop.f32.mrf.mxu0
        %v359 = vadd.f32 %v339, %v358
        %360 = vdwg.mxu0
        %361 = vmatpush.msra.mxu0 %v336
        %362 = vmatpush.msra.mxu0 %v335
        %363 = vmatpush.msra.mxu0 %v334
        %364 = vmatpush.msra.mxu0 %v333
        %365 = vmatpush.msra.mxu0 %v332
        %366 = vmatpush.msra.mxu0 %v331
        %367 = vmatpush.msra.mxu0 %v330
        %368 = vmatpush.msra.mxu0 %v329
        %369 = vmatpush.msra.mxu0 %v328
        %370 = vmatpush.msra.mxu0 %v327
        %371 = vmatpush.msra.mxu0 %v326
        %372 = vmatpush.msra.mxu0 %v325
        %373 = vmatpush.msra.mxu0 %v324
        %374 = vmatpush.msra.mxu0 %v323
        %375 = vmatpush.msra.mxu0 %v322
        %376 = vmatpush.msra.mxu0 %v321
        %377 = vmatmul.f32.gmra.mxu0 %v304
        %v378 = vpop.f32.mrf.mxu0
        %v379 = vadd.f32 %v359, %v378
        %380 = vdwg.mxu0
        %381 = vst.msk [vmem:[%s215] sm:$0xff] %vm243, %v379
        %s382 = sand.u32 %s137, 1
        %s383 = scalar_lea.sflag [#allocation3], %s382
        %s384 = sand.u32 %s137, 1
        %s385 = smul.addr %s384, 8
        %s386 = scalar_lea.vmem [#allocation2], %s385
        // Predicated region
        $region41: #{tpu_custom_call.1} parent=39 // pred_check
          %p387 = pneg %p147
        $region42: #{tpu_custom_call.1} parent=39 // pred_check_branch
          %389 = sbr.rel (%p387) target = $region44
        $region43: #{tpu_custom_call.1} parent=39 // pred_region
          %391 = vsyncadd %s383, 0
          %s392 = smul.addr %s19, 8
          %s393 = scalar_lea.hbm %s5, %s392
          %s395 = sshll.u32 %s386, 4
          %s396 = int_to_ptr.vmem [resolvable:$true] %s395
          %s397 = sshll.u32 %s393, 4
          %s398 = int_to_ptr.hbm [resolvable:$true] %s397
          %400 = dma.vmem_to_hbm [thread:$0]  %s396, 128, %s398, %s383
        $region44: #{tpu_custom_call.1} parent=39 // pred_fallthru
          _
      $region40: #{tpu_custom_call.1} parent=5 // pred_fallthru
        _
      %p401 = scmp.le.s32.totalorder 2, %s14
      // Predicated region
      $region45: #{tpu_custom_call.1} parent=5 // pred_check
        %p402 = pneg %p401
      $region46: #{tpu_custom_call.1} parent=5 // pred_check_branch
        %404 = sbr.rel (%p402) target = $region48
      $region47: #{tpu_custom_call.1} parent=5 // pred_region
        %s405 = ssub.s32 %s14, 2
        // Predicated region
        $region49: #{tpu_custom_call.1} parent=47 // pred_check
          %p406 = pneg %p153
        $region50: #{tpu_custom_call.1} parent=47 // pred_check_branch
          %408 = sbr.rel (%p406) target = $region52
        $region51: #{tpu_custom_call.1} parent=47 // pred_region
          %s409 = sand.u32 %s138, 1
          %s410 = scalar_lea.sflag [#allocation3], %s409
          %s411 = sand.u32 %s138, 1
          %s412 = smul.addr %s411, 8
          %s413 = scalar_lea.vmem [#allocation2], %s412
          %415 = dma.done %s410, 128
        $region52: #{tpu_custom_call.1} parent=47 // pred_fallthru
          _
      $region48: #{tpu_custom_call.1} parent=5 // pred_fallthru
        _
    $region6: #{tpu_custom_call.1} parent=1 // loop_footer
      %s18 = sadd.s32 1, %s14
    $region7: #{tpu_custom_call.1} parent=1 // loop_footer_branch
      %13 = sbr.rel target = $region3
    $region8: #{tpu_custom_call.1} parent=1 // loop_exit
      _
    %416 = vsyncpa [#allocation3], 1
    %s417 = scalar_lea.sflag [#allocation3], 1
    %418 = vsyncpa %s417, 1

</llo_original>
